<compile_context>
chip_gen: v6e
topology: v6e:2x2x1
jax: 0.10.0
libtpu: 0.0.40
codegen_flags: <defaults>
</compile_context>

<pallas_src>
import functools

import jax
import jax.numpy as jnp
from jax.experimental import pallas as pl
from jax.experimental.pallas import tpu as pltpu


def _ce_rows_kernel(pred_ref, label_ref, out_ref, *, n_total, tile_rows):
    """pred_ref: (TN, C) VMEM, label_ref: (TN, 1) i32 VMEM, out_ref: (TN, 1) f32."""
    i = pl.program_id(0)
    x = pred_ref[...].astype(jnp.float32)      # cast on the VPU, not in the wrapper
    labels = label_ref[...]                    # (TN, 1) int32
    tn, c = x.shape

    # Numerically stable log-sum-exp per row, kept 2-D (TN, 1).
    m = jnp.max(x, axis=-1, keepdims=True)
    lse = m + jnp.log(jnp.sum(jnp.exp(x - m), axis=-1, keepdims=True))

    # x[row, label[row]] via onehot select + row sum (no (TN, C) true_dist temp).
    col_ids = jax.lax.broadcasted_iota(jnp.int32, (tn, c), 1)
    x_label = jnp.sum(jnp.where(col_ids == labels, x, 0.0), axis=-1, keepdims=True)

    per_row = lse - x_label                    # (TN, 1) cross-entropy per row

    # Mask rows that fall past the true batch size (ragged last tile).
    row_ids = jax.lax.broadcasted_iota(jnp.int32, (tn, 1), 0) + i * tile_rows
    out_ref[...] = jnp.where(row_ids < n_total, per_row, 0.0)


def _pick_tile_rows(n, c, itemsize):
    # ~2 MiB per pred tile: 2 inputs x 2 double-buffers stays far below the
    # 16 MiB scoped-VMEM default on v5e (32 MiB on v6e/v7x, 64 MiB physical v7x).
    budget_bytes = 2 * 1024 * 1024
    tn = budget_bytes // max(1, c * itemsize)
    tn = max(8, min(1024, (tn // 8) * 8))
    n_pad8 = ((n + 7) // 8) * 8
    return min(tn, n_pad8)


def cls_loss(pred, target, *, value_range):
    """JAX/Pallas equivalent of ClsLoss(range).forward(pred, target)."""
    n, c = pred.shape
    bin_size = value_range // c
    # Glue: bin raw targets into class labels (target // binSize).
    # NOTE: the (N, 1) int32 VMEM layout pads each label row to 128 lanes
    # (~512 B/row of VMEM) — negligible next to the pred tile for real C.
    labels = (target.astype(jnp.int32) // jnp.int32(bin_size)).reshape(n, 1)

    tn = _pick_tile_rows(n, c, pred.dtype.itemsize)
    num_tiles = pl.cdiv(n, tn)
    n_pad = num_tiles * tn

    kernel = functools.partial(_ce_rows_kernel, n_total=n, tile_rows=tn)

    cost = pl.CostEstimate(
        flops=6 * n * c,
        transcendentals=n * c + n,
        bytes_accessed=n * c * pred.dtype.itemsize + n * 4 + n_pad * 4,
    )

    per_row = pl.pallas_call(
        kernel,
        out_shape=jax.ShapeDtypeStruct((n_pad, 1), jnp.float32),
        grid=(num_tiles,),
        in_specs=[
            pl.BlockSpec((tn, c), lambda i: (i, 0)),
            pl.BlockSpec((tn, 1), lambda i: (i, 0)),
        ],
        out_specs=pl.BlockSpec((tn, 1), lambda i: (i, 0)),
        compiler_params=pltpu.CompilerParams(dimension_semantics=("parallel",)),
        cost_estimate=cost,
    )(pred, labels)

    # Tiny epilogue: masked rows contributed 0, so sum all and divide by true N.
    return jnp.sum(per_row) / jnp.float32(n)


def _reference_loss(pred, target, *, value_range):
    """Pure-JAX reference mirroring the PyTorch module."""
    n, c = pred.shape
    bin_size = value_range // c
    labels = target.astype(jnp.int32) // bin_size
    logp = jax.nn.log_softmax(pred.astype(jnp.float32), axis=-1)
    return -jnp.mean(logp[jnp.arange(n), labels])


if __name__ == "__main__":
    key = jax.random.PRNGKey(0)
    k_pred, k_tgt = jax.random.split(key)

    N = 8            # batch
    C = 32           # classes (pred.size(1))
    VALUE_RANGE = 64 # __range__

    pred = jax.random.normal(k_pred, (N, C), dtype=jnp.float32)
    target = jax.random.randint(k_tgt, (N,), 0, VALUE_RANGE, dtype=jnp.int32)

    loss = cls_loss(pred, target, value_range=VALUE_RANGE)
    loss = jax.block_until_ready(loss)

    ref = _reference_loss(pred, target, value_range=VALUE_RANGE)
    assert jnp.allclose(loss, ref, rtol=1e-5, atol=1e-5), (loss, ref)

    print("KERNEL_OK")
</pallas_src>

<mosaic_0001>
module attributes {stable_mosaic.version = 11 : i64} {
  func.func @_ce_rows_kernel(%arg0: i32, %arg1: memref<8x32xf32, #tpu.memory_space<vmem>>, %arg2: memref<8x1xi32, #tpu.memory_space<vmem>>, %arg3: memref<8x1xf32, #tpu.memory_space<vmem>>) attributes {dimension_semantics = [#tpu.dimension_semantics<parallel>], iteration_bounds = array<i64: 1>, scalar_prefetch = 0 : i64, scratch_operands = 0 : i64, tpu.core_type = #tpu.core_type<tc>, window_params = [{transform_indices = @transform_0, window_bounds = array<i64: 8, 32>}, {transform_indices = @transform_1, window_bounds = array<i64: 8, 1>}, {transform_indices = @transform_2, window_bounds = array<i64: 8, 1>}]} {
    %c0 = arith.constant 0 : index
    %c0_0 = arith.constant 0 : index
    %0 = vector.load %arg1[%c0, %c0_0] : memref<8x32xf32, #tpu.memory_space<vmem>>, vector<8x32xf32>
    %c0_1 = arith.constant 0 : index
    %c0_2 = arith.constant 0 : index
    %1 = vector.load %arg2[%c0_1, %c0_2] : memref<8x1xi32, #tpu.memory_space<vmem>>, vector<8x1xi32>
    %cst = arith.constant dense<0xFF800000> : vector<8xf32>
    %2 = vector.multi_reduction <maximumf>, %0, %cst [1] : vector<8x32xf32> to vector<8xf32>
    %3 = vector.shape_cast %2 : vector<8xf32> to vector<8x1xf32>
    %4 = vector.broadcast %3 : vector<8x1xf32> to vector<8x32xf32>
    %5 = arith.subf %0, %4 : vector<8x32xf32>
    %6 = math.exp %5 : vector<8x32xf32>
    %cst_3 = arith.constant dense<0.000000e+00> : vector<8xf32>
    %7 = vector.multi_reduction <add>, %6, %cst_3 [1] : vector<8x32xf32> to vector<8xf32>
    %8 = vector.shape_cast %7 : vector<8xf32> to vector<8x1xf32>
    %9 = math.log %8 : vector<8x1xf32>
    %10 = arith.addf %3, %9 : vector<8x1xf32>
    %11 = tpu.iota {dimensions = array<i32: 1>} : vector<8x32xi32>
    %12 = vector.broadcast %1 : vector<8x1xi32> to vector<8x32xi32>
    %13 = arith.cmpi eq, %11, %12 : vector<8x32xi32>
    %cst_4 = arith.constant 0.000000e+00 : f32
    %14 = vector.broadcast %cst_4 : f32 to vector<8x32xf32>
    %15 = arith.select %13, %0, %14 : vector<8x32xi1>, vector<8x32xf32>
    %cst_5 = arith.constant dense<0.000000e+00> : vector<8xf32>
    %16 = vector.multi_reduction <add>, %15, %cst_5 [1] : vector<8x32xf32> to vector<8xf32>
    %17 = vector.shape_cast %16 : vector<8xf32> to vector<8x1xf32>
    %18 = arith.subf %10, %17 : vector<8x1xf32>
    %19 = tpu.iota {dimensions = array<i32: 0>} : vector<8x1xi32>
    %c8_i32 = arith.constant 8 : i32
    %20 = arith.muli %arg0, %c8_i32 : i32
    %21 = vector.broadcast %20 : i32 to vector<8x1xi32>
    %22 = arith.addi %19, %21 : vector<8x1xi32>
    %c8_i32_6 = arith.constant 8 : i32
    %23 = vector.broadcast %c8_i32_6 : i32 to vector<8x1xi32>
    %24 = arith.cmpi slt, %22, %23 : vector<8x1xi32>
    %cst_7 = arith.constant 0.000000e+00 : f32
    %25 = vector.broadcast %cst_7 : f32 to vector<8x1xf32>
    %26 = arith.select %24, %18, %25 : vector<8x1xi1>, vector<8x1xf32>
    %c0_8 = arith.constant 0 : index
    %c0_9 = arith.constant 0 : index
    %27 = vector.load %arg3[%c0_8, %c0_9] : memref<8x1xf32, #tpu.memory_space<vmem>>, vector<8x1xf32>
    tpu.vector_store %arg3[%c0_8, %c0_9], %26 {strides = array<i32>} : memref<8x1xf32, #tpu.memory_space<vmem>>, vector<8x1xf32>,
    return
  }
  func.func @transform_0(%arg0: i32) -> (i32, i32) {
    %c0_i32 = arith.constant 0 : i32
    %c0_i32_0 = arith.constant 0 : i32
    return %arg0, %c0_i32 : i32, i32
  }
  func.func @transform_1(%arg0: i32) -> (i32, i32) {
    %c0_i32 = arith.constant 0 : i32
    %c0_i32_0 = arith.constant 0 : i32
    return %arg0, %c0_i32 : i32, i32
  }
  func.func @transform_2(%arg0: i32) -> (i32, i32) {
    %c0_i32 = arith.constant 0 : i32
    %c0_i32_0 = arith.constant 0 : i32
    return %arg0, %c0_i32 : i32, i32
  }
}

</mosaic_0001>

<llo_original>
// kernel: tpu_custom_call.1
$region0: #{tpu_custom_call.1}
  #allocation0 [shape = 'u32[]', space=smem, size = 0x4, offset = 0x4, fixed_abs, tag = 'smem constant byte address 0x4 - core index']
  #allocation1 [shape = 'u32[144,128]{1,0:T(1,128)}', space=vmem, size = 0x12000, scoped, tag = 'internal scratch']
  %s0 = inlined_call_operand.vmem [shape: f32[8,32], index: 0, kind: input, shape index: {}]
  %s1 = inlined_call_operand.vmem [shape: s32[8,1], index: 1, kind: input, shape index: {}]
  %s2 = inlined_call_operand.vmem [shape: f32[8,1], index: 2, kind: output, shape index: {}]
  %s3 = sld [smem:[#allocation0]]
  $region18: #{tpu_custom_call.1} parent=0
    _
  %s5 = ssub.s32 1, %s3
  %s6 = scalar_select 0, %s5, %s3
  // Predicated region
  $region2: #{tpu_custom_call.1} parent=0 // pred_check
    _
  $region3: #{tpu_custom_call.1} parent=0 // pred_check_branch
    %8 = sbr.rel (0) target = $region5
  $region4: #{tpu_custom_call.1} parent=0 // pred_region
    _
  $region5: #{tpu_custom_call.1} parent=0 // pred_fallthru
    _
  // Predicated region
  $region6: #{tpu_custom_call.1} parent=0 // pred_check
    _
  $region7: #{tpu_custom_call.1} parent=0 // pred_check_branch
    %10 = sbr.rel (0) target = $region9
  $region8: #{tpu_custom_call.1} parent=0 // pred_region
    _
  $region9: #{tpu_custom_call.1} parent=0 // pred_fallthru
    _
  %v11 = vld [vmem:[%s0] sm:$0xff]
  %v12 = vld [vmem:[%s1] sm:$0xff]
  %vm13 = vcmask 261120
  %v14 = vsel %vm13, %v11, -inf
  %15 = vmax.xlane.f32.xlu0 %v14
  %v16 = vpop.xlane.xlu0 %15
  %v17 = vsub.f32 %v11, %v16
  %v18 = vmul.f32 %v17, 1.442695
  %v19 = vpow.pop %v18
  %v20 = vsel %vm13, %v19, 0.0
  %21 = vadd.xlane.f32.xlu0 %v20
  %v22 = vpop.xlane.xlu0 %21
  %v23 = vlog2.pop %v22
  %v24 = vmul.f32 %v23, 0.6931472
  %v25 = vadd.f32 %v16, %v24
  %v26 = vlaneseq
  %v27 = vand.u32 %v26, 127
  %28 = vset.pattern.permute.xlu0 0
  %29 = vperm.xlu0 %28, %v12
  %v30 = vpop.permute.xlu0 %29
  %vm31 = vcmp.eq.s32.totalorder %v27, %v30
  %v32 = vsel %vm31, %v11, 0.0
  %v33 = vsel %vm13, %v32, 0.0
  %34 = vadd.xlane.f32.xlu0 %v33
  %v35 = vpop.xlane.xlu0 %34
  %v36 = vsub.f32 %v25, %v35
  %v37 = vlaneseq
  %v38 = vshrl.u32 %v37, 7
  %s39 = smul.u32 0, 8
  %v40 = vstv %s39
  %v41 = vadd.s32 %v38, %v40
  %vm42 = vcmp.lt.s32.totalorder %v41, 8
  %v43 = vsel %vm42, %v36, 0.0
  %vm44 = vcmask 7168
  %45 = vst.msk [vmem:[%s2] sm:$0xff] %vm44, %v43
  // Predicated region
  $region10: #{tpu_custom_call.1} parent=0 // pred_check
    _
  $region11: #{tpu_custom_call.1} parent=0 // pred_check_branch
    %47 = sbr.rel (0) target = $region13
  $region12: #{tpu_custom_call.1} parent=0 // pred_region
    _
  $region13: #{tpu_custom_call.1} parent=0 // pred_fallthru
    _
  // Predicated region
  $region14: #{tpu_custom_call.1} parent=0 // pred_check
    _
  $region15: #{tpu_custom_call.1} parent=0 // pred_check_branch
    %49 = sbr.rel (0) target = $region17
  $region16: #{tpu_custom_call.1} parent=0 // pred_region
    _
  $region17: #{tpu_custom_call.1} parent=0 // pred_fallthru
    _

</llo_original>
